<compile_context>
chip_gen: v5e
topology: v5e:2x2
jax: 0.10.0
libtpu: 0.0.40
codegen_flags: <defaults>
</compile_context>

<pallas_src>
import functools

import jax
import jax.numpy as jnp
from jax.experimental import pallas as pl
from jax.experimental.pallas import tpu as pltpu


def _round_up(x, m):
    return (x + m - 1) // m * m


_SUBLANE = 16          # row-tile granularity safe for both f32 and bf16 blocks
_MIN_GRID_STEPS = 4    # >= 2 pipelined steps per TensorCore on 2-TC (v7x) parts


def _default_tm_max():
    # Smaller-VMEM parts (v7x: 64 MiB / TensorCore) get a smaller batch tile;
    # 128 MiB parts (v5e/v6e) take the bigger tile to amortise per-step cost.
    try:
        vmem = pltpu.get_tpu_info().vmem_capacity_bytes
    except Exception:   # config query only (never wraps kernel execution)
        return 512
    return 512 if vmem <= (64 << 20) else 1024


def _choose_row_tile(N, tm_max):
    """Pick (row_tile, grid). Z is never padded:
    * N <= tm_max : one block whose shape equals the full array (always legal).
    * N >  tm_max : blocks of `tm` rows (multiple of 16, tm <= N); the final
      block may be partial — Pallas masks the out-of-range rows on load/store.
    """
    if N <= tm_max:
        return N, 1
    g = max(pl.cdiv(N, tm_max), _MIN_GRID_STEPS)
    tm = min(tm_max, _round_up(pl.cdiv(N, g), _SUBLANE))
    return tm, pl.cdiv(N, tm)


def _make_ffn_kernel(d_out):
    def kernel(z_ref, w1_ref, b1_ref, w2_ref, b2_ref, o_ref):
        # Layer 1 on the MXU: bf16 (or f32) inputs, f32 accumulation.
        h = jnp.dot(z_ref[...], w1_ref[...], preferred_element_type=jnp.float32)
        h = jnp.maximum(h + b1_ref[...], 0.0)            # bias + ReLU in f32
        # Layer 2: keep h in f32 (accuracy); W2 is lane-padded to a 128
        # multiple for a clean MXU lowering — padding columns are zero.
        o = jnp.dot(h, w2_ref[...], preferred_element_type=jnp.float32)
        o = o + b2_ref[...]
        # output_transform = nn.Identity() -> no-op.
        # Store only the real d_out columns: the HBM writeback stays 1x-sized.
        o_ref[...] = o[:, :d_out].astype(o_ref.dtype)
    return kernel


@functools.partial(jax.jit, static_argnames=("tm_max", "compute_dtype"))
def ffn_predictor_forward(Z, W1, b1, W2, b2, *, tm_max=None,
                          compute_dtype=jnp.bfloat16):
    """Z: (N, d_in); W1: (d_in, d_hid); b1: (1, d_hid) or (d_hid,);
    W2: (d_hid, d_out); b2: (1, d_out) or (d_out,). Returns (N, d_out).

    compute_dtype controls the streaming precision of Z/W1 only; accumulation,
    bias, ReLU and layer 2 are always f32. Pass jnp.float32 for an exact path.
    """
    N, d_in = Z.shape
    d_in_w, d_hid = W1.shape
    d_hid_w, d_out = W2.shape
    assert d_in_w == d_in and d_hid_w == d_hid
    out_dtype = Z.dtype

    if tm_max is None:
        tm_max = _default_tm_max()

    # Low-precision streaming of the big operands only.
    Zc = Z.astype(compute_dtype)
    W1c = W1.astype(compute_dtype)
    b1f = b1.reshape(1, d_hid).astype(jnp.float32)

    # W2/b2 are tiny: keep f32, lane-pad the output dim to a 128 multiple.
    # (In a real model this weight prep would be hoisted to load time.)
    d_out_p = _round_up(d_out, 128)
    W2p = jnp.pad(W2.astype(jnp.float32), ((0, 0), (0, d_out_p - d_out)))
    b2p = jnp.pad(b2.reshape(1, d_out).astype(jnp.float32),
                  ((0, 0), (0, d_out_p - d_out)))

    tm, grid = _choose_row_tile(N, tm_max)

    cost = pl.CostEstimate(
        flops=2 * N * (d_in * d_hid + d_hid * d_out),
        transcendentals=0,
        bytes_accessed=(Zc.size * Zc.dtype.itemsize
                        + W1c.size * W1c.dtype.itemsize
                        + (d_hid * d_out + d_hid + d_out) * 4
                        + N * d_out * jnp.dtype(out_dtype).itemsize),
    )

    out = pl.pallas_call(
        _make_ffn_kernel(d_out),
        out_shape=jax.ShapeDtypeStruct((N, d_out), out_dtype),
        grid_spec=pl.GridSpec(
            grid=(grid,),
            in_specs=[
                pl.BlockSpec((tm, d_in), lambda i: (i, 0)),        # Z (streamed)
                pl.BlockSpec((d_in, d_hid), lambda i: (0, 0)),     # W1 (resident)
                pl.BlockSpec((1, d_hid), lambda i: (0, 0)),        # b1
                pl.BlockSpec((d_hid, d_out_p), lambda i: (0, 0)),  # W2 (lane-padded)
                pl.BlockSpec((1, d_out_p), lambda i: (0, 0)),      # b2
            ],
            out_specs=pl.BlockSpec((tm, d_out), lambda i: (i, 0)),
        ),
        compiler_params=pltpu.CompilerParams(
            dimension_semantics=("parallel",),
        ),
        cost_estimate=cost,
    )(Zc, W1c, b1f, W2p, b2p)
    return out


def ffn_predictor_reference(Z, W1, b1, W2, b2):
    h = jnp.maximum(Z @ W1 + b1.reshape(1, -1), 0.0)
    return h @ W2 + b2.reshape(1, -1)


if __name__ == "__main__":
    key = jax.random.PRNGKey(0)
    k_z, k_w1, k_b1, k_w2, k_b2, k_z2 = jax.random.split(key, 6)

    # Small shapes consistent with the module (n_tasks=1, n_targets=1,
    # n_layers=1 -> output_dim = 1). N deliberately not a multiple of 8/16.
    N, d_in, d_hid, d_out = 20, 48, 64, 1

    Z = jax.random.normal(k_z, (N, d_in), jnp.float32)
    W1 = 0.1 * jax.random.normal(k_w1, (d_in, d_hid), jnp.float32)
    b1 = 0.1 * jax.random.normal(k_b1, (1, d_hid), jnp.float32)
    W2 = 0.1 * jax.random.normal(k_w2, (d_hid, d_out), jnp.float32)
    b2 = 0.1 * jax.random.normal(k_b2, (1, d_out), jnp.float32)

    ref = ffn_predictor_reference(Z, W1, b1, W2, b2)

    # Default path: bf16 streaming of Z/W1, f32 accumulation/bias/ReLU/layer-2.
    out = jax.block_until_ready(ffn_predictor_forward(Z, W1, b1, W2, b2))
    assert out.shape == (N, d_out)
    assert jnp.allclose(out, ref, atol=5e-2, rtol=5e-2), "bf16-streaming mismatch"

    # Full-f32 path (tight tolerance) + multi-step grid with a partial final
    # row tile: N=300, tm_max=128 -> 4 steps of 80 rows, last tile ragged.
    N2 = 300
    Z2 = jax.random.normal(k_z2, (N2, d_in), jnp.float32)
    ref2 = ffn_predictor_reference(Z2, W1, b1, W2, b2)
    out2 = jax.block_until_ready(
        ffn_predictor_forward(Z2, W1, b1, W2, b2,
                              tm_max=128, compute_dtype=jnp.float32))
    assert out2.shape == (N2, d_out)
    assert jnp.allclose(out2, ref2, atol=2e-4, rtol=2e-4), "f32 mismatch vs reference"

    # TODO(synk): training-mode dropout (p>0) would need pltpu.prng_*; it is a
    # no-op in this eval-time forward (default dropout=0.0), as is the default
    # output_transform = nn.Identity().
    print("KERNEL_OK")
</pallas_src>

<mosaic_0001>
module attributes {stable_mosaic.version = 11 : i64} {
  func.func @kernel(%arg0: i32, %arg1: memref<20x48xbf16, #tpu.memory_space<vmem>>, %arg2: memref<48x64xbf16, #tpu.memory_space<vmem>>, %arg3: memref<1x64xf32, #tpu.memory_space<vmem>>, %arg4: memref<64x128xf32, #tpu.memory_space<vmem>>, %arg5: memref<1x128xf32, #tpu.memory_space<vmem>>, %arg6: memref<20x1xf32, #tpu.memory_space<vmem>>) attributes {dimension_semantics = [#tpu.dimension_semantics<parallel>], iteration_bounds = array<i64: 1>, scalar_prefetch = 0 : i64, scratch_operands = 0 : i64, tpu.core_type = #tpu.core_type<tc>, window_params = [{transform_indices = @transform_0, window_bounds = array<i64: 20, 48>}, {pipeline_mode = #tpu.pipeline_mode<synchronous>, transform_indices = @transform_1, window_bounds = array<i64: 48, 64>}, {pipeline_mode = #tpu.pipeline_mode<synchronous>, transform_indices = @transform_2, window_bounds = array<i64: 1, 64>}, {pipeline_mode = #tpu.pipeline_mode<synchronous>, transform_indices = @transform_3, window_bounds = array<i64: 64, 128>}, {pipeline_mode = #tpu.pipeline_mode<synchronous>, transform_indices = @transform_4, window_bounds = array<i64: 1, 128>}, {transform_indices = @transform_5, window_bounds = array<i64: 20, 1>}]} {
    %c0 = arith.constant 0 : index
    %c0_0 = arith.constant 0 : index
    %0 = vector.load %arg1[%c0, %c0_0] : memref<20x48xbf16, #tpu.memory_space<vmem>>, vector<20x48xbf16>
    %c0_1 = arith.constant 0 : index
    %c0_2 = arith.constant 0 : index
    %1 = vector.load %arg2[%c0_1, %c0_2] : memref<48x64xbf16, #tpu.memory_space<vmem>>, vector<48x64xbf16>
    %cst = arith.constant dense<0.000000e+00> : vector<20x64xf32>
    %2 = tpu.matmul %0, %1, %cst {dimension_numbers = #tpu.dot_dimension_numbers<[1], [0], [0], [1], [0, 0, 1, 1], [], []>} : vector<20x48xbf16>, vector<48x64xbf16>, vector<20x64xf32> -> vector<20x64xf32>
    %c0_3 = arith.constant 0 : index
    %c0_4 = arith.constant 0 : index
    %3 = vector.load %arg3[%c0_3, %c0_4] : memref<1x64xf32, #tpu.memory_space<vmem>>, vector<1x64xf32>
    %4 = vector.broadcast %3 : vector<1x64xf32> to vector<20x64xf32>
    %5 = arith.addf %2, %4 : vector<20x64xf32>
    %cst_5 = arith.constant 0.000000e+00 : f32
    %6 = vector.broadcast %cst_5 : f32 to vector<20x64xf32>
    %7 = arith.maximumf %5, %6 : vector<20x64xf32>
    %c0_6 = arith.constant 0 : index
    %c0_7 = arith.constant 0 : index
    %8 = vector.load %arg4[%c0_6, %c0_7] : memref<64x128xf32, #tpu.memory_space<vmem>>, vector<64x128xf32>
    %cst_8 = arith.constant dense<0.000000e+00> : vector<20x128xf32>
    %9 = tpu.matmul %7, %8, %cst_8 {dimension_numbers = #tpu.dot_dimension_numbers<[1], [0], [0], [1], [0, 0, 1, 1], [], []>} : vector<20x64xf32>, vector<64x128xf32>, vector<20x128xf32> -> vector<20x128xf32>
    %c0_9 = arith.constant 0 : index
    %c0_10 = arith.constant 0 : index
    %10 = vector.load %arg5[%c0_9, %c0_10] : memref<1x128xf32, #tpu.memory_space<vmem>>, vector<1x128xf32>
    %11 = vector.broadcast %10 : vector<1x128xf32> to vector<20x128xf32>
    %12 = arith.addf %9, %11 : vector<20x128xf32>
    %13 = vector.extract_strided_slice %12 {offsets = [0, 0], sizes = [20, 1], strides = [1, 1]} : vector<20x128xf32> to vector<20x1xf32>
    %c0_11 = arith.constant 0 : index
    %c0_12 = arith.constant 0 : index
    %14 = vector.load %arg6[%c0_11, %c0_12] : memref<20x1xf32, #tpu.memory_space<vmem>>, vector<20x1xf32>
    tpu.vector_store %arg6[%c0_11, %c0_12], %13 {strides = array<i32>} : memref<20x1xf32, #tpu.memory_space<vmem>>, vector<20x1xf32>,
    return
  }
  func.func @transform_0(%arg0: i32) -> (i32, i32) {
    %c0_i32 = arith.constant 0 : i32
    %c0_i32_0 = arith.constant 0 : i32
    return %arg0, %c0_i32 : i32, i32
  }
  func.func @transform_1(%arg0: i32) -> (i32, i32) {
    %c0_i32 = arith.constant 0 : i32
    %c0_i32_0 = arith.constant 0 : i32
    %c0_i32_1 = arith.constant 0 : i32
    return %c0_i32, %c0_i32_0 : i32, i32
  }
  func.func @transform_2(%arg0: i32) -> (i32, i32) {
    %c0_i32 = arith.constant 0 : i32
    %c0_i32_0 = arith.constant 0 : i32
    %c0_i32_1 = arith.constant 0 : i32
    return %c0_i32, %c0_i32_0 : i32, i32
  }
  func.func @transform_3(%arg0: i32) -> (i32, i32) {
    %c0_i32 = arith.constant 0 : i32
    %c0_i32_0 = arith.constant 0 : i32
    %c0_i32_1 = arith.constant 0 : i32
    return %c0_i32, %c0_i32_0 : i32, i32
  }
  func.func @transform_4(%arg0: i32) -> (i32, i32) {
    %c0_i32 = arith.constant 0 : i32
    %c0_i32_0 = arith.constant 0 : i32
    %c0_i32_1 = arith.constant 0 : i32
    return %c0_i32, %c0_i32_0 : i32, i32
  }
  func.func @transform_5(%arg0: i32) -> (i32, i32) {
    %c0_i32 = arith.constant 0 : i32
    %c0_i32_0 = arith.constant 0 : i32
    return %arg0, %c0_i32 : i32, i32
  }
}

</mosaic_0001>

<llo_original>
// kernel: ffn_predictor_forward.1
$region0: #{ffn_predictor_forward.1}
  #allocation0 [shape = 'u32[]', space=smem, size = 0x4, offset = 0x4, fixed_abs, tag = 'smem constant byte address 0x4 - core index']
  #allocation1 [shape = 'u32[72,128]{1,0:T(1,128)}', space=vmem, size = 0x9000, scoped, tag = 'internal scratch']
  %s0 = inlined_call_operand.vmem [shape: bf16[20,48], index: 0, kind: input, shape index: {}]
  %s1 = inlined_call_operand.vmem [shape: bf16[48,64], index: 1, kind: input, shape index: {}]
  %s2 = inlined_call_operand.vmem [shape: f32[1,64], index: 2, kind: input, shape index: {}]
  %s3 = inlined_call_operand.vmem [shape: f32[64,128], index: 3, kind: input, shape index: {}]
  %s4 = inlined_call_operand.vmem [shape: f32[1,128], index: 4, kind: input, shape index: {}]
  %s5 = inlined_call_operand.vmem [shape: f32[20,1], index: 5, kind: output, shape index: {}]
  %s6 = sld [smem:[#allocation0]]
  $region30: #{ffn_predictor_forward.1} parent=0
    _
  %s8 = ssub.s32 1, %s6
  %s9 = scalar_select 0, %s8, %s6
  // Predicated region
  $region2: #{ffn_predictor_forward.1} parent=0 // pred_check
    _
  $region3: #{ffn_predictor_forward.1} parent=0 // pred_check_branch
    %11 = sbr.rel (0) target = $region5
  $region4: #{ffn_predictor_forward.1} parent=0 // pred_region
    _
  $region5: #{ffn_predictor_forward.1} parent=0 // pred_fallthru
    _
  // Predicated region
  $region6: #{ffn_predictor_forward.1} parent=0 // pred_check
    _
  $region7: #{ffn_predictor_forward.1} parent=0 // pred_check_branch
    %13 = sbr.rel (0) target = $region9
  $region8: #{ffn_predictor_forward.1} parent=0 // pred_region
    _
  $region9: #{ffn_predictor_forward.1} parent=0 // pred_fallthru
    _
  // Predicated region
  $region10: #{ffn_predictor_forward.1} parent=0 // pred_check
    _
  $region11: #{ffn_predictor_forward.1} parent=0 // pred_check_branch
    %15 = sbr.rel (0) target = $region13
  $region12: #{ffn_predictor_forward.1} parent=0 // pred_region
    _
  $region13: #{ffn_predictor_forward.1} parent=0 // pred_fallthru
    _
  // Predicated region
  $region14: #{ffn_predictor_forward.1} parent=0 // pred_check
    _
  $region15: #{ffn_predictor_forward.1} parent=0 // pred_check_branch
    %17 = sbr.rel (0) target = $region17
  $region16: #{ffn_predictor_forward.1} parent=0 // pred_region
    _
  $region17: #{ffn_predictor_forward.1} parent=0 // pred_fallthru
    _
  // Predicated region
  $region18: #{ffn_predictor_forward.1} parent=0 // pred_check
    _
  $region19: #{ffn_predictor_forward.1} parent=0 // pred_check_branch
    %19 = sbr.rel (0) target = $region21
  $region20: #{ffn_predictor_forward.1} parent=0 // pred_region
    _
  $region21: #{ffn_predictor_forward.1} parent=0 // pred_fallthru
    _
  %v21 = vld [vmem:[%s0] sm:$0xf]
  %v22 = vld [vmem:[%s0 + $0x4] sm:$0xf]
  %v23 = vld [vmem:[%s0 + $0x8] sm:$0x3]
  %v24 = vld [vmem:[%s1] sm:$0xf]
  %v25 = vld [vmem:[%s1 + $0x4] sm:$0xf]
  %v26 = vld [vmem:[%s1 + $0x8] sm:$0xf]
  %v27 = vld [vmem:[%s1 + $0xc] sm:$0xf]
  %v28 = vld [vmem:[%s1 + $0x10] sm:$0xf]
  %v29 = vld [vmem:[%s1 + $0x14] sm:$0xf]
  %v30 = vld [vmem:[%s2] sm:$0x1]
  %v32 = vperm.slane %v30, 0
  %v37 = vunpack.c.l.b16 %v21
  %v38 = vunpack.c.l.b16 %v22
  %v39 = vunpack.c.l.b16 %v23
  %v40 = vpack.c.b16 %v38, %v37
  %v41 = vpack.c.b16 %v39, %v39
  %v48 = vunpack.c.l.b16 %v24
  %v49 = vunpack.c.l.b16 %v25
  %v50 = vunpack.c.l.b16 %v26
  %v51 = vunpack.c.l.b16 %v27
  %v52 = vunpack.c.l.b16 %v28
  %v53 = vunpack.c.l.b16 %v29
  %v54 = vpack.c.b16 %v49, %v48
  %v55 = vpack.c.b16 %v51, %v50
  %v56 = vpack.c.b16 %v53, %v52
  %vm60 = vcmask 392192
  %v62 = vsel %vm60, %v40, 0
  %v65 = vsel %vm60, %v41, 0
  %67 = vmatpush.bf16.msra.mxu0 0
  %68 = vmatpush.bf16.msra.mxu0 0
  %69 = vmatpush.bf16.msra.mxu0 0
  %70 = vmatpush.bf16.msra.mxu0 0
  %71 = vmatpush.bf16.msra.mxu0 0
  %72 = vmatpush.bf16.msra.mxu0 %v56
  %73 = vmatpush.bf16.msra.mxu0 %v55
  %74 = vmatpush.bf16.msra.mxu0 %v54
  %75 = vmatmul.bf16.gmra.mxu0 %v62
  %v76 = vpop.f32.mrf.mxu0
  %v77 = vadd.f32 %v32, %v76
  %v78 = vpop.f32.mrf.mxu0
  %v79 = vadd.f32 %v32, %v78
  %80 = vmatmul.bf16.gmra.mxu0 %v65
  %v81 = vpop.f32.mrf.mxu0
  %v82 = vadd.f32 %v32, %v81
  %v83 = vpop.f32.mrf.mxu0
  %84 = vdwg.mxu0
  %v85 = vmax.f32 %v77, 0.0
  %v86 = vmax.f32 %v79, 0.0
  %v87 = vmax.f32 %v82, 0.0
  %v88 = vld [vmem:[%s3] sm:$0xff]
  %v89 = vld [vmem:[%s3 + $0x8] sm:$0xff]
  %v90 = vld [vmem:[%s3 + $0x10] sm:$0xff]
  %v91 = vld [vmem:[%s3 + $0x18] sm:$0xff]
  %v92 = vld [vmem:[%s3 + $0x20] sm:$0xff]
  %v93 = vld [vmem:[%s3 + $0x28] sm:$0xff]
  %v94 = vld [vmem:[%s3 + $0x30] sm:$0xff]
  %v95 = vld [vmem:[%s3 + $0x38] sm:$0xff]
  %v96 = vld [vmem:[%s4] sm:$0x1]
  %v98 = vperm.slane %v96, 0
  %vm100 = vcmask 523264
  %v102 = vsel %vm100, %v85, 0
  %v105 = vsel %vm100, %v86, 0
  %v108 = vsel %vm100, %v87, 0
  %110 = vmatpush.msra.mxu0 0.0
  %111 = vmatpush.msra.mxu0 0.0
  %112 = vmatpush.msra.mxu0 0.0
  %113 = vmatpush.msra.mxu0 0.0
  %114 = vmatpush.msra.mxu0 0.0
  %115 = vmatpush.msra.mxu0 0.0
  %116 = vmatpush.msra.mxu0 0.0
  %117 = vmatpush.msra.mxu0 0.0
  %118 = vmatpush.msra.mxu0 %v95
  %119 = vmatpush.msra.mxu0 %v94
  %120 = vmatpush.msra.mxu0 %v93
  %121 = vmatpush.msra.mxu0 %v92
  %122 = vmatpush.msra.mxu0 %v91
  %123 = vmatpush.msra.mxu0 %v90
  %124 = vmatpush.msra.mxu0 %v89
  %125 = vmatpush.msra.mxu0 %v88
  %126 = vmatmul.f32.gmra.mxu0 %v102
  %v127 = vpop.f32.mrf.mxu0
  %v128 = vadd.f32 %v98, %v127
  %129 = vmatmul.f32.gmra.mxu0 %v105
  %v130 = vpop.f32.mrf.mxu0
  %v131 = vadd.f32 %v98, %v130
  %132 = vmatmul.f32.gmra.mxu0 %v108
  %v133 = vpop.f32.mrf.mxu0
  %v134 = vadd.f32 %v98, %v133
  %135 = vdwg.mxu0
  %vm136 = vcmask 7168
  %137 = vst.msk [vmem:[%s5] sm:$0xff] %vm136, %v128
  %138 = vst.msk [vmem:[%s5 + $0x8] sm:$0xff] %vm136, %v131
  %vm139 = vcmask 3072
  %140 = vst.msk [vmem:[%s5 + $0x10] sm:$0xf] %vm139, %v134
  // Predicated region
  $region22: #{ffn_predictor_forward.1} parent=0 // pred_check
    _
  $region23: #{ffn_predictor_forward.1} parent=0 // pred_check_branch
    %142 = sbr.rel (0) target = $region25
  $region24: #{ffn_predictor_forward.1} parent=0 // pred_region
    _
  $region25: #{ffn_predictor_forward.1} parent=0 // pred_fallthru
    _
  // Predicated region
  $region26: #{ffn_predictor_forward.1} parent=0 // pred_check
    _
  $region27: #{ffn_predictor_forward.1} parent=0 // pred_check_branch
    %144 = sbr.rel (0) target = $region29
  $region28: #{ffn_predictor_forward.1} parent=0 // pred_region
    _
  $region29: #{ffn_predictor_forward.1} parent=0 // pred_fallthru
    _

</llo_original>
